<compile_context>
chip_gen: v7x
topology: tpu7x:2x2x1
jax: 0.10.0
libtpu: 0.0.40
codegen_flags: <defaults>
</compile_context>

<pallas_src>
import functools
import math

import jax
import jax.numpy as jnp
from jax.experimental import pallas as pl
from jax.experimental.pallas import tpu as pltpu

LANES = 512                    # lane width for the flat fallback (multiple of 128)
ROW_GRAN = 32                  # row-tile granularity safe for f32 / bf16 / int8
SMALL_INPUT_ELEMS = 1 << 20    # below this a fused XLA affine beats a kernel launch


def _round_up(n, m):
    return ((n + m - 1) // m) * m


def _target_block_bytes():
    """~4 MiB blocks on v6e/v7x, ~2 MiB on v5e and older.

    4 buffers (double-buffered in + out) x block stays under the scoped-VMEM
    default on every generation, so no vmem_limit_bytes override is needed.
    """
    try:
        kind = jax.devices()[0].device_kind.lower()
    except Exception:
        kind = ""
    if any(v in kind for v in ("v2", "v3", "v4", "v5")):
        return 2 * 1024 * 1024
    return 4 * 1024 * 1024


def _choose_tile_rows(rows, lanes, itemsize, target_block_bytes):
    if rows <= ROW_GRAN:
        # single block equal to the full array in the row dim (always legal)
        return rows
    max_tile = max((target_block_bytes // (lanes * itemsize)) // ROW_GRAN * ROW_GRAN,
                   ROW_GRAN)
    # guarantee >= 2 blocks so the 'parallel' axis can shard across v7x's 2 TCs
    half = _round_up(pl.cdiv(rows, 2), ROW_GRAN)
    return min(max_tile, half, _round_up(rows, ROW_GRAN))


def _center_shift_kernel(x_ref, o_ref, *, scale, bias):
    """out = scale * x + bias in f32 (scale = 1 - alpha, bias = alpha / C)."""
    x = x_ref[...].astype(jnp.float32)
    o_ref[...] = (x * scale + bias).astype(o_ref.dtype)


def _run_affine_kernel(x2, scale, bias, total, itemsize, donate):
    rows, lanes = x2.shape
    tile_rows = _choose_tile_rows(rows, lanes, itemsize, _target_block_bytes())
    kernel = functools.partial(_center_shift_kernel, scale=scale, bias=bias)
    return pl.pallas_call(
        kernel,
        out_shape=jax.ShapeDtypeStruct((rows, lanes), x2.dtype),
        grid=(pl.cdiv(rows, tile_rows),),
        in_specs=[pl.BlockSpec((tile_rows, lanes), lambda i: (i, 0))],
        out_specs=pl.BlockSpec((tile_rows, lanes), lambda i: (i, 0)),
        compiler_params=pltpu.CompilerParams(
            dimension_semantics=("parallel",)),
        cost_estimate=pl.CostEstimate(
            flops=2 * total, transcendentals=0,
            bytes_accessed=2 * total * itemsize),
        input_output_aliases=({0: 0} if donate else {}),
    )(x2)


def center_shift(x, logp=None, alpha=1e-5, *,
                 donate=False, min_kernel_elements=SMALL_INPUT_ELEMS):
    """Pallas implementation of CenterShift.forward (alpha is the buffer value)."""
    orig_shape = x.shape
    num_classes = int(orig_shape[-1])
    alpha = float(alpha)
    scale = 1.0 - alpha
    bias = alpha / float(num_classes)

    total = 1
    for d in orig_shape:
        total *= int(d)
    itemsize = jnp.dtype(x.dtype).itemsize

    if total < min_kernel_elements:
        # small-input fallback: XLA fuses the affine; avoids launch/plumbing overhead
        out = (x.astype(jnp.float32) * scale + bias).astype(x.dtype)
    elif num_classes % 128 == 0:
        # fast path: collapse leading dims, last dim is already lane-dense
        rows = total // num_classes
        out2 = _run_affine_kernel(x.reshape(rows, num_classes),
                                  scale, bias, total, itemsize, donate)
        out = out2.reshape(orig_shape)
    else:
        lanes = None
        for cand in (512, 256, 128):
            if total % cand == 0:
                lanes = cand
                break
        if lanes is not None:
            # still a free reshape of contiguous data -> no pad, no output slice
            rows = total // lanes
            out2 = _run_affine_kernel(x.reshape(rows, lanes),
                                      scale, bias, total, itemsize, donate)
            out = out2.reshape(orig_shape)
        else:
            # truly ragged sizes only: pad flat data to a lane multiple.
            # Partial final row-block is masked by Pallas (no row padding).
            rows = pl.cdiv(total, LANES)
            flat = jnp.pad(x.reshape(-1), (0, rows * LANES - total))
            out2 = _run_affine_kernel(flat.reshape(rows, LANES),
                                      scale, bias, total, itemsize, donate=False)
            out = out2.reshape(-1)[:total].reshape(orig_shape)

    if logp is None:
        return out

    # logp shift: scalar correction (matches the PyTorch spec: prod(x.shape[1:]))
    dims_prod = 1
    for d in orig_shape[1:]:
        dims_prod *= int(d)
    logp_out = logp - math.log1p(-alpha) * float(dims_prod)
    return out, logp_out


if __name__ == "__main__":
    key = jax.random.PRNGKey(0)
    k1, k2, k3, k4 = jax.random.split(key, 4)
    alpha = 1e-5

    def ref_fwd(x, logp=None):
        C = x.shape[-1]
        c = jnp.ones_like(x) / C
        out = alpha * c + (1.0 - alpha) * x
        if logp is None:
            return out
        dims = 1
        for d in x.shape[1:]:
            dims *= int(d)
        return out, logp - jnp.log1p(jnp.float32(-alpha)) * float(dims)

    # case 1: small shape -> fused-XLA fallback path
    B, S, C = 2, 8, 32
    x_small = jax.nn.softmax(jax.random.normal(k1, (B, S, C), jnp.float32), -1)
    logp = jax.random.normal(k2, (B, 1), jnp.float32)
    out = jax.block_until_ready(center_shift(x_small, alpha=alpha))
    assert out.shape == x_small.shape and out.dtype == x_small.dtype
    assert jnp.allclose(out, ref_fwd(x_small), atol=1e-6, rtol=1e-6)

    # case 2: same small shape, forced through the Pallas kernel (one (1,512) block)
    out2, logp2 = center_shift(x_small, logp, alpha=alpha, min_kernel_elements=0)
    out2 = jax.block_until_ready(out2)
    logp2 = jax.block_until_ready(logp2)
    ref_out2, ref_logp2 = ref_fwd(x_small, logp)
    assert jnp.allclose(out2, ref_out2, atol=1e-6, rtol=1e-6)
    assert logp2.shape == logp.shape
    assert jnp.allclose(logp2, ref_logp2, atol=1e-6, rtol=1e-6)

    # case 3: lane-dense last dim (C % 128 == 0) -> no-pad fast path, multi-block grid
    B, S, C = 4, 64, 512
    x_med = jax.nn.softmax(jax.random.normal(k3, (B, S, C), jnp.float32), -1)
    out3 = jax.block_until_ready(
        center_shift(x_med, alpha=alpha, min_kernel_elements=0))
    assert jnp.allclose(out3, ref_fwd(x_med), atol=1e-6, rtol=1e-6)

    # case 4: ragged total -> padded fallback path (only path with an extra pad pass)
    x_rag = jax.nn.softmax(jax.random.normal(k4, (3, 7, 9), jnp.float32), -1)
    out4 = jax.block_until_ready(
        center_shift(x_rag, alpha=alpha, min_kernel_elements=0))
    assert out4.shape == x_rag.shape
    assert jnp.allclose(out4, ref_fwd(x_rag), atol=1e-6, rtol=1e-6)

    print("KERNEL_OK")
</pallas_src>

<mosaic_0001>
module attributes {stable_mosaic.version = 11 : i64} {
  func.func @_center_shift_kernel(%arg0: i32, %arg1: memref<1x512xf32, #tpu.memory_space<vmem>>, %arg2: memref<1x512xf32, #tpu.memory_space<vmem>>) attributes {dimension_semantics = [#tpu.dimension_semantics<parallel>], iteration_bounds = array<i64: 1>, scalar_prefetch = 0 : i64, scratch_operands = 0 : i64, tpu.core_type = #tpu.core_type<tc>, window_params = [{transform_indices = @transform_0, window_bounds = array<i64: 1, 512>}, {transform_indices = @transform_1, window_bounds = array<i64: 1, 512>}]} {
    %c0 = arith.constant 0 : index
    %c0_0 = arith.constant 0 : index
    %0 = vector.load %arg1[%c0, %c0_0] : memref<1x512xf32, #tpu.memory_space<vmem>>, vector<1x512xf32>
    %cst = arith.constant 0.999989986 : f32
    %1 = vector.broadcast %cst : f32 to vector<1x512xf32>
    %2 = arith.mulf %0, %1 : vector<1x512xf32>
    %cst_1 = arith.constant 3.125000e-07 : f32
    %3 = vector.broadcast %cst_1 : f32 to vector<1x512xf32>
    %4 = arith.addf %2, %3 : vector<1x512xf32>
    %c0_2 = arith.constant 0 : index
    %c0_3 = arith.constant 0 : index
    %5 = vector.load %arg2[%c0_2, %c0_3] : memref<1x512xf32, #tpu.memory_space<vmem>>, vector<1x512xf32>
    tpu.vector_store %arg2[%c0_2, %c0_3], %4 {strides = array<i32>} : memref<1x512xf32, #tpu.memory_space<vmem>>, vector<1x512xf32>,
    return
  }
  func.func @transform_0(%arg0: i32) -> (i32, i32) {
    %c0_i32 = arith.constant 0 : i32
    %c0_i32_0 = arith.constant 0 : i32
    return %arg0, %c0_i32 : i32, i32
  }
  func.func @transform_1(%arg0: i32) -> (i32, i32) {
    %c0_i32 = arith.constant 0 : i32
    %c0_i32_0 = arith.constant 0 : i32
    return %arg0, %c0_i32 : i32, i32
  }
}

</mosaic_0001>

<llo_original>
// kernel: tpu_custom_call.1
$region0: #{tpu_custom_call.1}
  #allocation0 [shape = 'u32[]', space=smem, size = 0x4, offset = 0x4, fixed_abs, tag = 'smem constant byte address 0x4 - core index']
  #allocation1 [shape = 'u32[144,128]{1,0:T(1,128)}', space=vmem, size = 0x12000, scoped, tag = 'internal scratch']
  %s0 = inlined_call_operand.hbm [shape: f32[1,512], index: 0, kind: input, shape index: {}]
  %s1 = inlined_call_operand.hbm [shape: f32[1,512], index: 1, kind: output, shape index: {}]
  %s2 = sld [smem:[#allocation0]]
  $region18: #{tpu_custom_call.1} parent=0
    _
  %s4 = ssub.s32 1, %s2
  %s5 = scalar_select 0, %s4, %s2
  $region1: #{tpu_custom_call.1} parent=0
    #allocation2 [shape = 'u8[2048]{0}', space=vmem, size = 0x800, scoped, tag = 'input window, operand 0, single buffered']
    #allocation3 [shape = 's32[1]{0}', space=sflag, size = 0x4, scoped, tag = 'scoped memory for tpu_custom_call.1']
    #allocation4 [shape = 's32[1]{0}', space=sflag, size = 0x4, scoped, tag = 'scoped memory for tpu_custom_call.1']
    #allocation5 [shape = 'u8[2048]{0}', space=vmem, size = 0x800, scoped, tag = 'output window, operand 0, single buffered']
    %6 = vsyncpa [#allocation3], 0
    %7 = vsyncpa [#allocation4], 0
    // Predicated region
    $region2: #{tpu_custom_call.1} parent=1 // pred_check
      _
    $region3: #{tpu_custom_call.1} parent=1 // pred_check_branch
      %9 = sbr.rel (0) target = $region5
    $region4: #{tpu_custom_call.1} parent=1 // pred_region
      %s11 = ssub.s32 64, 64
      %12 = vsyncadd [#allocation3], %s11
      %s14 = sshll.u32 [#allocation2], 4
      %s15 = int_to_ptr.vmem [resolvable:$true] %s14
      %17 = dma.hbm_to_vmem [thread:$0]  %s0, 64, %s15, [#allocation3]
    $region5: #{tpu_custom_call.1} parent=1 // pred_fallthru
      _
    // Predicated region
    $region6: #{tpu_custom_call.1} parent=1 // pred_check
      _
    $region7: #{tpu_custom_call.1} parent=1 // pred_check_branch
      %19 = sbr.rel (0) target = $region9
    $region8: #{tpu_custom_call.1} parent=1 // pred_region
      %20 = dma.done [#allocation3], 64
    $region9: #{tpu_custom_call.1} parent=1 // pred_fallthru
      _
    %v21 = vld [vmem:[#allocation2] sm:$0xf]
    %v22 = vmul.f32 %v21, 0.99999
    %v23 = vadd.f32 %v22, 3.125e-07
    %v24 = vlaneseq
    %vm25 = vcmp.ge.s32.totalorder %v24, 0
    %vm26 = vcmp.lt.s32.totalorder %v24, 512
    %vm27 = vmand %vm25, %vm26
    %28 = vst.msk [vmem:[#allocation5] sm:$0xf] %vm27, %v23
    // Predicated region
    $region10: #{tpu_custom_call.1} parent=1 // pred_check
      _
    $region11: #{tpu_custom_call.1} parent=1 // pred_check_branch
      %30 = sbr.rel (0) target = $region13
    $region12: #{tpu_custom_call.1} parent=1 // pred_region
      %s32 = ssub.s32 64, 64
      %33 = vsyncadd [#allocation4], %s32
      %s35 = sshll.u32 [#allocation5], 4
      %s36 = int_to_ptr.vmem [resolvable:$true] %s35
      %38 = dma.vmem_to_hbm [thread:$0]  %s36, 64, %s1, [#allocation4]
    $region13: #{tpu_custom_call.1} parent=1 // pred_fallthru
      _
    // Predicated region
    $region14: #{tpu_custom_call.1} parent=1 // pred_check
      _
    $region15: #{tpu_custom_call.1} parent=1 // pred_check_branch
      %40 = sbr.rel (0) target = $region17
    $region16: #{tpu_custom_call.1} parent=1 // pred_region
      %41 = dma.done [#allocation4], 64
    $region17: #{tpu_custom_call.1} parent=1 // pred_fallthru
      _
    %42 = vsyncpa [#allocation3], 1
    %43 = vsyncpa [#allocation4], 1

</llo_original>
